<compile_context>
chip_gen: v6e
topology: v6e:2x2x1
jax: 0.10.0
libtpu: 0.0.40
codegen_flags: <defaults>
</compile_context>

<pallas_src>
import functools
from typing import NamedTuple

import jax
import jax.numpy as jnp
from jax.experimental import pallas as pl
from jax.experimental.pallas import tpu as pltpu


def _round_up(x, m):
    return (x + m - 1) // m * m


# ---------------------------------------------------------------------------
# Fused "backbone + recons head" kernel: one GEMM + per-row bias per grid step.
# ---------------------------------------------------------------------------
def _recons_gemm_kernel(x_ref, w_ref, b_ref, y_ref):
    # x_ref: [TILE_M, Pdim] bf16  -- flattened patch rows (row = b * n_patches + t)
    # w_ref: [Pdim, NPAD]   bf16  -- fused weight W_patch @ W_rec (grid-invariant)
    # b_ref: [TILE_M, NPAD] f32   -- per-row bias: (b_patch + pos[1+t]) @ W_rec + b_rec
    # y_ref: [TILE_M, NPAD] f32
    y = jnp.dot(x_ref[...], w_ref[...], preferred_element_type=jnp.float32)  # MXU, f32 acc
    y_ref[...] = (y + b_ref[...]).astype(y_ref.dtype)


def fused_recons_gemm(x_rows, w_fused, bias_rows, *, tile_m):
    """[M_pad, Pdim] bf16 rows -> [M_pad, NPAD] f32 recons-head outputs."""
    m_pad, p_dim = x_rows.shape
    n_pad = w_fused.shape[1]
    grid = (m_pad // tile_m,)
    return pl.pallas_call(
        _recons_gemm_kernel,
        out_shape=jax.ShapeDtypeStruct((m_pad, n_pad), jnp.float32),
        grid_spec=pltpu.PrefetchScalarGridSpec(
            num_scalar_prefetch=0,
            grid=grid,  # row tiles; keep grid length even when scaling up (v7x 2-TC balance)
            in_specs=[
                pl.BlockSpec((tile_m, p_dim), lambda i: (i, 0)),
                # Grid-invariant weight (index_map constant -> no re-DMA). At real ViT sizes,
                # also consider pipeline_mode=pl.Buffered(1) to halve its VMEM on v7x.
                pl.BlockSpec((p_dim, n_pad), lambda i: (0, 0)),
                pl.BlockSpec((tile_m, n_pad), lambda i: (i, 0)),
            ],
            out_specs=pl.BlockSpec((tile_m, n_pad), lambda i: (i, 0)),
        ),
        compiler_params=pltpu.CompilerParams(
            dimension_semantics=("parallel",),  # independent row tiles; v7x shards across TCs
        ),
    )(x_rows, w_fused, bias_rows)
    # TODO(synk): tile the K (=Pdim) contraction with an accumulator if patch_dim grows
    # beyond what a single VMEM-resident weight slab allows.


# ---------------------------------------------------------------------------
# Synthetic FullPipline params
# ---------------------------------------------------------------------------
def init_params(key, *, in_ch, patch, embed_dim, n_patches, head_out, recon_out):
    ks = jax.random.split(key, 6)
    patch_dim = in_ch * patch * patch
    scale_pe = 1.0 / jnp.sqrt(jnp.float32(patch_dim))
    scale_d = 1.0 / jnp.sqrt(jnp.float32(embed_dim))
    return {
        # patch embedding (== Conv2d(C, D, kernel=P, stride=P) flattened)
        "w_patch": jax.random.normal(ks[0], (patch_dim, embed_dim), jnp.float32) * scale_pe,
        "b_patch": jnp.zeros((embed_dim,), jnp.float32),
        "cls_token": jax.random.normal(ks[1], (1, 1, embed_dim), jnp.float32) * 0.02,
        "pos_embed": jax.random.normal(ks[2], (1, n_patches + 1, embed_dim), jnp.float32) * 0.02,
        # head (applied to CLS token)
        "w_head": jax.random.normal(ks[3], (embed_dim, head_out), jnp.float32) * scale_d,
        "b_head": jnp.zeros((head_out,), jnp.float32),
        # head_recons (applied to patch tokens)
        "w_rec": jax.random.normal(ks[4], (embed_dim, recon_out), jnp.float32) * scale_d,
        "b_rec": jnp.zeros((recon_out,), jnp.float32),
    }


def _unfold_patches(x, patch):
    """NCHW -> [B, n_patches, C*P*P], matching Conv2d(kernel=P, stride=P)."""
    # TODO(synk): express this patch gather via a BlockSpec index_map over an NHWC-laid-out
    # input so the transpose/reshape doesn't cost a separate HBM pass before the kernel.
    B, C, H, W = x.shape
    gh, gw = H // patch, W // patch
    x = x.reshape(B, C, gh, patch, gw, patch)
    x = jnp.transpose(x, (0, 2, 4, 1, 3, 5))            # [B, gh, gw, C, P, P]
    return x.reshape(B, gh * gw, C * patch * patch)


# ---------------------------------------------------------------------------
# One-time preparation (all param-only packing / casting / bias folding lives here,
# NOT in the per-call jitted forward).
# ---------------------------------------------------------------------------
class PipelineConfig(NamedTuple):
    patch: int
    n_patches: int
    patch_dim: int
    head_out: int
    recon_out: int
    n_pad: int     # lane-padded recons output width (multiple of 128)
    tile_m: int    # rows per grid step
    m: int         # valid rows = batch * n_patches
    m_pad: int     # rows padded to a multiple of tile_m


def prepare_pipeline(params, *, batch, patch, height, width, head_out, recon_out):
    hi = jax.lax.Precision.HIGHEST
    patch_dim, embed_dim = params["w_patch"].shape
    n_patches = (height // patch) * (width // patch)

    n_pad = _round_up(max(recon_out, 128), 128)
    m = batch * n_patches
    # 256-row tiles fill the 256-wide v6e/v7x MXU (128 suffices on v5e); tiny inputs use all rows.
    tile_m = 256 if m >= 256 else _round_up(m, 8)
    m_pad = _round_up(m, tile_m)

    # (1) Fused recons weight: (x @ W_patch + ...) @ W_rec == x @ (W_patch @ W_rec) + ...
    #     Valid because this synthetic backbone has no nonlinearity between patch-embed and heads.
    w_fused = jnp.dot(params["w_patch"], params["w_rec"], precision=hi)        # [Pdim, recon_out]
    w_fused = jnp.pad(w_fused, ((0, 0), (0, n_pad - recon_out))).astype(jnp.bfloat16)

    # (2) Per-token recons bias folded through the head, tiled over the batch to match the
    #     flattened row order (row = b * n_patches + t). Built once, reused every forward.
    pos_patch = params["pos_embed"][0, 1:]                                      # [Np, D]
    bias_tok = jnp.dot(pos_patch + params["b_patch"], params["w_rec"], precision=hi) + params["b_rec"]
    bias_tok = jnp.pad(bias_tok, ((0, 0), (0, n_pad - recon_out)))              # [Np, n_pad] f32
    bias_rows = jnp.tile(bias_tok, (batch, 1))                                  # [m, n_pad]
    if m_pad > m:
        bias_rows = jnp.pad(bias_rows, ((0, m_pad - m), (0, 0)))

    # (3) CLS head output. NOTE: with this synthetic attention-free backbone the CLS token never
    #     mixes with patch data, so head(_out[:, 0]) is a param-only constant row broadcast over
    #     the batch. A real transformer backbone would make it data-dependent -> route it through
    #     the kernel (extra packed output columns) instead.
    cls_tok = params["cls_token"].reshape(embed_dim) + params["pos_embed"][0, 0]
    cls_row = jnp.dot(cls_tok, params["w_head"], precision=hi) + params["b_head"]   # [head_out]

    consts = {"w_fused": w_fused, "bias_rows": bias_rows, "cls_row": cls_row}
    cfg = PipelineConfig(patch=patch, n_patches=n_patches, patch_dim=patch_dim,
                         head_out=head_out, recon_out=recon_out, n_pad=n_pad,
                         tile_m=tile_m, m=m, m_pad=m_pad)
    return consts, cfg


# ---------------------------------------------------------------------------
# Hot forward: cheap unfold/flatten glue + a single Pallas launch.
# ---------------------------------------------------------------------------
@functools.partial(jax.jit, static_argnames=("cfg", "recons"))
def full_pipeline_forward(consts, x, *, cfg, recons=True):
    B = x.shape[0]
    assert B * cfg.n_patches == cfg.m, "prepare_pipeline was built for a different batch size"

    # head(_out[:, 0]) -- param-only constant for this synthetic backbone (see prepare_pipeline).
    cls_out = jnp.broadcast_to(consts["cls_row"], (B, cfg.head_out))
    if not recons:
        return cls_out, None   # CLS-only fast path: no kernel launch, no recons work at all

    patches = _unfold_patches(x, cfg.patch)                                     # [B, Np, Pdim]
    x_rows = patches.reshape(B * cfg.n_patches, cfg.patch_dim).astype(jnp.bfloat16)
    if cfg.m_pad > cfg.m:
        x_rows = jnp.pad(x_rows, ((0, cfg.m_pad - cfg.m), (0, 0)))

    y = fused_recons_gemm(x_rows, consts["w_fused"], consts["bias_rows"],
                          tile_m=cfg.tile_m)                                     # [M_pad, NPAD] f32

    # Recons columns start at lane offset 0 -> lane-aligned slice; padded rows dropped.
    rec_out = y[:cfg.m].reshape(B, cfg.n_patches, cfg.n_pad)[:, :, :cfg.recon_out]
    return cls_out, rec_out


# ---------------------------------------------------------------------------
# Pure-f32, PyTorch-faithful reference (unfused, unquantized).
# ---------------------------------------------------------------------------
def _reference(params, x, patch):
    hi = jax.lax.Precision.HIGHEST
    B, C, H, W = x.shape
    D = params["w_patch"].shape[1]
    patches = _unfold_patches(x, patch)                                          # [B, Np, Pdim]
    emb = jnp.einsum("bnp,pd->bnd", patches, params["w_patch"], precision=hi) + params["b_patch"]
    cls = jnp.broadcast_to(params["cls_token"], (B, 1, D))
    tok = jnp.concatenate([cls, emb], axis=1) + params["pos_embed"]              # [B, Np+1, D]
    cls_out = jnp.einsum("bd,do->bo", tok[:, 0], params["w_head"], precision=hi) + params["b_head"]
    rec_out = jnp.einsum("bnd,do->bno", tok[:, 1:], params["w_rec"], precision=hi) + params["b_rec"]
    return cls_out, rec_out


if __name__ == "__main__":
    B, C, H, W = 2, 4, 16, 16
    PATCH = 8
    EMBED_DIM = 32
    HEAD_OUT = 32
    RECON_OUT = 64
    N_PATCHES = (H // PATCH) * (W // PATCH)

    key = jax.random.PRNGKey(0)
    k_x, k_p = jax.random.split(key)
    x = jax.random.normal(k_x, (B, C, H, W), jnp.float32)
    params = init_params(
        k_p, in_ch=C, patch=PATCH, embed_dim=EMBED_DIM,
        n_patches=N_PATCHES, head_out=HEAD_OUT, recon_out=RECON_OUT,
    )

    # One-time packing / weight fusion (outside the per-call hot path).
    consts, cfg = prepare_pipeline(
        params, batch=B, patch=PATCH, height=H, width=W,
        head_out=HEAD_OUT, recon_out=RECON_OUT,
    )

    cls_out, rec_out = full_pipeline_forward(consts, x, cfg=cfg, recons=True)
    jax.block_until_ready((cls_out, rec_out))

    ref_cls, ref_rec = _reference(params, x, PATCH)
    assert cls_out.shape == (B, HEAD_OUT)
    assert rec_out.shape == (B, N_PATCHES, RECON_OUT)
    # bf16 matmul operands (f32 accumulation) vs pure-f32 reference -> bf16-level tolerance.
    assert jnp.allclose(cls_out, ref_cls, atol=2e-2, rtol=2e-2)
    assert jnp.allclose(rec_out, ref_rec, atol=2e-2, rtol=2e-2)

    # recons=False path: no kernel launch, CLS only.
    cls_only, none_out = full_pipeline_forward(consts, x, cfg=cfg, recons=False)
    jax.block_until_ready(cls_only)
    assert none_out is None
    assert jnp.allclose(cls_only, ref_cls, atol=2e-2, rtol=2e-2)

    print("KERNEL_OK")
</pallas_src>

<mosaic_0001>
module attributes {stable_mosaic.version = 11 : i64} {
  func.func @_recons_gemm_kernel(%arg0: i32, %arg1: memref<8x256xbf16, #tpu.memory_space<vmem>>, %arg2: memref<256x128xbf16, #tpu.memory_space<vmem>>, %arg3: memref<8x128xf32, #tpu.memory_space<vmem>>, %arg4: memref<8x128xf32, #tpu.memory_space<vmem>>) attributes {dimension_semantics = [#tpu.dimension_semantics<parallel>], iteration_bounds = array<i64: 1>, scalar_prefetch = 0 : i64, scratch_operands = 0 : i64, tpu.core_type = #tpu.core_type<tc>, window_params = [{transform_indices = @transform_0, window_bounds = array<i64: 8, 256>}, {pipeline_mode = #tpu.pipeline_mode<synchronous>, transform_indices = @transform_1, window_bounds = array<i64: 256, 128>}, {transform_indices = @transform_2, window_bounds = array<i64: 8, 128>}, {transform_indices = @transform_3, window_bounds = array<i64: 8, 128>}]} {
    %c0 = arith.constant 0 : index
    %c0_0 = arith.constant 0 : index
    %0 = vector.load %arg1[%c0, %c0_0] : memref<8x256xbf16, #tpu.memory_space<vmem>>, vector<8x256xbf16>
    %c0_1 = arith.constant 0 : index
    %c0_2 = arith.constant 0 : index
    %1 = vector.load %arg2[%c0_1, %c0_2] : memref<256x128xbf16, #tpu.memory_space<vmem>>, vector<256x128xbf16>
    %cst = arith.constant dense<0.000000e+00> : vector<8x128xf32>
    %2 = tpu.matmul %0, %1, %cst {dimension_numbers = #tpu.dot_dimension_numbers<[1], [0], [0], [1], [0, 0, 1, 1], [], []>} : vector<8x256xbf16>, vector<256x128xbf16>, vector<8x128xf32> -> vector<8x128xf32>
    %c0_3 = arith.constant 0 : index
    %c0_4 = arith.constant 0 : index
    %3 = vector.load %arg3[%c0_3, %c0_4] : memref<8x128xf32, #tpu.memory_space<vmem>>, vector<8x128xf32>
    %4 = arith.addf %2, %3 : vector<8x128xf32>
    %c0_5 = arith.constant 0 : index
    %c0_6 = arith.constant 0 : index
    %5 = vector.load %arg4[%c0_5, %c0_6] : memref<8x128xf32, #tpu.memory_space<vmem>>, vector<8x128xf32>
    tpu.vector_store %arg4[%c0_5, %c0_6], %4 {strides = array<i32>} : memref<8x128xf32, #tpu.memory_space<vmem>>, vector<8x128xf32>,
    return
  }
  func.func @transform_0(%arg0: i32) -> (i32, i32) {
    %c0_i32 = arith.constant 0 : i32
    %c0_i32_0 = arith.constant 0 : i32
    return %arg0, %c0_i32 : i32, i32
  }
  func.func @transform_1(%arg0: i32) -> (i32, i32) {
    %c0_i32 = arith.constant 0 : i32
    %c0_i32_0 = arith.constant 0 : i32
    %c0_i32_1 = arith.constant 0 : i32
    return %c0_i32, %c0_i32_0 : i32, i32
  }
  func.func @transform_2(%arg0: i32) -> (i32, i32) {
    %c0_i32 = arith.constant 0 : i32
    %c0_i32_0 = arith.constant 0 : i32
    return %arg0, %c0_i32 : i32, i32
  }
  func.func @transform_3(%arg0: i32) -> (i32, i32) {
    %c0_i32 = arith.constant 0 : i32
    %c0_i32_0 = arith.constant 0 : i32
    return %arg0, %c0_i32 : i32, i32
  }
}

</mosaic_0001>

<llo_original>
// kernel: full_pipeline_forward.1
$region0: #{full_pipeline_forward.1}
  #allocation0 [shape = 'u32[]', space=smem, size = 0x4, offset = 0x4, fixed_abs, tag = 'smem constant byte address 0x4 - core index']
  #allocation1 [shape = 'u32[144,128]{1,0:T(1,128)}', space=vmem, size = 0x12000, scoped, tag = 'internal scratch']
  %s0 = inlined_call_operand.vmem [shape: bf16[8,256], index: 0, kind: input, shape index: {}]
  %s1 = inlined_call_operand.vmem [shape: bf16[256,128], index: 1, kind: input, shape index: {}]
  %s2 = inlined_call_operand.vmem [shape: f32[8,128], index: 2, kind: input, shape index: {}]
  %s3 = inlined_call_operand.hbm [shape: f32[8,128], index: 3, kind: output, shape index: {}]
  %s4 = sld [smem:[#allocation0]]
  $region22: #{full_pipeline_forward.1} parent=0
    _
  %s6 = ssub.s32 1, %s4
  %s7 = scalar_select 0, %s6, %s4
  $region1: #{full_pipeline_forward.1} parent=0
    #allocation2 [shape = 'u8[4096]{0}', space=vmem, size = 0x1000, scoped, tag = 'output window, operand 0, single buffered']
    #allocation3 [shape = 's32[1]{0}', space=sflag, size = 0x4, scoped, tag = 'scoped memory for full_pipeline_forward.1']
    %8 = vsyncpa [#allocation3], 0
    // Predicated region
    $region2: #{full_pipeline_forward.1} parent=1 // pred_check
      _
    $region3: #{full_pipeline_forward.1} parent=1 // pred_check_branch
      %10 = sbr.rel (0) target = $region5
    $region4: #{full_pipeline_forward.1} parent=1 // pred_region
      _
    $region5: #{full_pipeline_forward.1} parent=1 // pred_fallthru
      _
    // Predicated region
    $region6: #{full_pipeline_forward.1} parent=1 // pred_check
      _
    $region7: #{full_pipeline_forward.1} parent=1 // pred_check_branch
      %12 = sbr.rel (0) target = $region9
    $region8: #{full_pipeline_forward.1} parent=1 // pred_region
      _
    $region9: #{full_pipeline_forward.1} parent=1 // pred_fallthru
      _
    // Predicated region
    $region10: #{full_pipeline_forward.1} parent=1 // pred_check
      _
    $region11: #{full_pipeline_forward.1} parent=1 // pred_check_branch
      %14 = sbr.rel (0) target = $region13
    $region12: #{full_pipeline_forward.1} parent=1 // pred_region
      _
    $region13: #{full_pipeline_forward.1} parent=1 // pred_fallthru
      _
    %v16 = vld [vmem:[%s0] sm:$0xff]
    %v17 = vld [vmem:[%s1] sm:$0xf]
    %v18 = vld [vmem:[%s1 + $0x4] sm:$0xf]
    %v19 = vld [vmem:[%s1 + $0x8] sm:$0xf]
    %v20 = vld [vmem:[%s1 + $0xc] sm:$0xf]
    %v21 = vld [vmem:[%s1 + $0x10] sm:$0xf]
    %v22 = vld [vmem:[%s1 + $0x14] sm:$0xf]
    %v23 = vld [vmem:[%s1 + $0x18] sm:$0xf]
    %v24 = vld [vmem:[%s1 + $0x1c] sm:$0xf]
    %v25 = vld [vmem:[%s1 + $0x20] sm:$0xf]
    %v26 = vld [vmem:[%s1 + $0x24] sm:$0xf]
    %v27 = vld [vmem:[%s1 + $0x28] sm:$0xf]
    %v28 = vld [vmem:[%s1 + $0x2c] sm:$0xf]
    %v29 = vld [vmem:[%s1 + $0x30] sm:$0xf]
    %v30 = vld [vmem:[%s1 + $0x34] sm:$0xf]
    %v31 = vld [vmem:[%s1 + $0x38] sm:$0xf]
    %v32 = vld [vmem:[%s1 + $0x3c] sm:$0xf]
    %v33 = vld [vmem:[%s1 + $0x40] sm:$0xf]
    %v34 = vld [vmem:[%s1 + $0x44] sm:$0xf]
    %v35 = vld [vmem:[%s1 + $0x48] sm:$0xf]
    %v36 = vld [vmem:[%s1 + $0x4c] sm:$0xf]
    %v37 = vld [vmem:[%s1 + $0x50] sm:$0xf]
    %v38 = vld [vmem:[%s1 + $0x54] sm:$0xf]
    %v39 = vld [vmem:[%s1 + $0x58] sm:$0xf]
    %v40 = vld [vmem:[%s1 + $0x5c] sm:$0xf]
    %v41 = vld [vmem:[%s1 + $0x60] sm:$0xf]
    %v42 = vld [vmem:[%s1 + $0x64] sm:$0xf]
    %v43 = vld [vmem:[%s1 + $0x68] sm:$0xf]
    %v44 = vld [vmem:[%s1 + $0x6c] sm:$0xf]
    %v45 = vld [vmem:[%s1 + $0x70] sm:$0xf]
    %v46 = vld [vmem:[%s1 + $0x74] sm:$0xf]
    %v47 = vld [vmem:[%s1 + $0x78] sm:$0xf]
    %v48 = vld [vmem:[%s1 + $0x7c] sm:$0xf]
    %v49 = vld [vmem:[%s2] sm:$0xff]
    %v51 = vunpack.c.l.b16 %v16
    %v52 = vunpack.c.h.b16 %v16
    %v53 = vpack.c.b16 %v51, %v51
    %v54 = vpack.c.b16 %v52, %v52
    %v89 = vunpack.c.l.b16 %v17
    %v90 = vunpack.c.l.b16 %v18
    %v91 = vunpack.c.l.b16 %v19
    %v92 = vunpack.c.l.b16 %v20
    %v93 = vunpack.c.l.b16 %v21
    %v94 = vunpack.c.l.b16 %v22
    %v95 = vunpack.c.l.b16 %v23
    %v96 = vunpack.c.l.b16 %v24
    %v97 = vunpack.c.l.b16 %v25
    %v98 = vunpack.c.l.b16 %v26
    %v99 = vunpack.c.l.b16 %v27
    %v100 = vunpack.c.l.b16 %v28
    %v101 = vunpack.c.l.b16 %v29
    %v102 = vunpack.c.l.b16 %v30
    %v103 = vunpack.c.l.b16 %v31
    %v104 = vunpack.c.l.b16 %v32
    %v105 = vunpack.c.l.b16 %v33
    %v106 = vunpack.c.l.b16 %v34
    %v107 = vunpack.c.l.b16 %v35
    %v108 = vunpack.c.l.b16 %v36
    %v109 = vunpack.c.l.b16 %v37
    %v110 = vunpack.c.l.b16 %v38
    %v111 = vunpack.c.l.b16 %v39
    %v112 = vunpack.c.l.b16 %v40
    %v113 = vunpack.c.l.b16 %v41
    %v114 = vunpack.c.l.b16 %v42
    %v115 = vunpack.c.l.b16 %v43
    %v116 = vunpack.c.l.b16 %v44
    %v117 = vunpack.c.l.b16 %v45
    %v118 = vunpack.c.l.b16 %v46
    %v119 = vunpack.c.l.b16 %v47
    %v120 = vunpack.c.l.b16 %v48
    %v121 = vpack.c.b16 %v90, %v89
    %v122 = vpack.c.b16 %v92, %v91
    %v123 = vpack.c.b16 %v94, %v93
    %v124 = vpack.c.b16 %v96, %v95
    %v125 = vpack.c.b16 %v98, %v97
    %v126 = vpack.c.b16 %v100, %v99
    %v127 = vpack.c.b16 %v102, %v101
    %v128 = vpack.c.b16 %v104, %v103
    %v129 = vpack.c.b16 %v106, %v105
    %v130 = vpack.c.b16 %v108, %v107
    %v131 = vpack.c.b16 %v110, %v109
    %v132 = vpack.c.b16 %v112, %v111
    %v133 = vpack.c.b16 %v114, %v113
    %v134 = vpack.c.b16 %v116, %v115
    %v135 = vpack.c.b16 %v118, %v117
    %v136 = vpack.c.b16 %v120, %v119
    %153 = vmatprep.subr.bf16.mxu0 0
    %154 = vmatpush1.bf16.msra.mxu0 %v128
    %155 = vmatprep.subr.bf16.mxu0 0
    %156 = vmatpush1.bf16.msra.mxu0 %v127
    %157 = vmatprep.subr.bf16.mxu0 0
    %158 = vmatpush1.bf16.msra.mxu0 %v126
    %159 = vmatprep.subr.bf16.mxu0 0
    %160 = vmatpush1.bf16.msra.mxu0 %v125
    %161 = vmatprep.subr.bf16.mxu0 0
    %162 = vmatpush1.bf16.msra.mxu0 %v124
    %163 = vmatprep.subr.bf16.mxu0 0
    %164 = vmatpush1.bf16.msra.mxu0 %v123
    %165 = vmatprep.subr.bf16.mxu0 0
    %166 = vmatpush1.bf16.msra.mxu0 %v122
    %167 = vmatprep.subr.bf16.mxu0 0
    %168 = vmatpush1.bf16.msra.mxu0 %v121
    %169 = vmatprep.subr.bf16.mxu0 0
    %170 = vmatpush2.bf16.msra.mxu0 %v136
    %171 = vmatprep.subr.bf16.mxu0 0
    %172 = vmatpush2.bf16.msra.mxu0 %v135
    %173 = vmatprep.subr.bf16.mxu0 0
    %174 = vmatpush2.bf16.msra.mxu0 %v134
    %175 = vmatprep.subr.bf16.mxu0 0
    %176 = vmatpush2.bf16.msra.mxu0 %v133
    %177 = vmatprep.subr.bf16.mxu0 0
    %178 = vmatpush2.bf16.msra.mxu0 %v132
    %179 = vmatprep.subr.bf16.mxu0 0
    %180 = vmatpush2.bf16.msra.mxu0 %v131
    %181 = vmatprep.subr.bf16.mxu0 0
    %182 = vmatpush2.bf16.msra.mxu0 %v130
    %183 = vmatprep.subr.bf16.mxu0 0
    %184 = vmatpush2.bf16.msra.mxu0 %v129
    %185 = vmatprep.mubr.bf16.mxu0 %v54
    %186 = vmatmul.mubr.bf16.gmra.mxu0 %v53
    %v187 = vpop.f32.mrf.mxu0
    %v188 = vadd.f32 %v49, %v187
    %v189 = vpop.f32.mrf.mxu0
    %v190 = vpop.f32.mrf.mxu0
    %v191 = vpop.f32.mrf.mxu0
    %192 = vdwg.mxu0
    %193 = vst [vmem:[#allocation2] sm:$0xff] %v188
    // Predicated region
    $region14: #{full_pipeline_forward.1} parent=1 // pred_check
      _
    $region15: #{full_pipeline_forward.1} parent=1 // pred_check_branch
      %195 = sbr.rel (0) target = $region17
    $region16: #{full_pipeline_forward.1} parent=1 // pred_region
      %s197 = ssub.s32 128, 128
      %198 = vsyncadd [#allocation3], %s197
      %s200 = sshll.u32 [#allocation2], 4
      %s201 = int_to_ptr.vmem [resolvable:$true] %s200
      %203 = dma.vmem_to_hbm [thread:$0]  %s201, 128, %s3, [#allocation3]
    $region17: #{full_pipeline_forward.1} parent=1 // pred_fallthru
      _
    // Predicated region
    $region18: #{full_pipeline_forward.1} parent=1 // pred_check
      _
    $region19: #{full_pipeline_forward.1} parent=1 // pred_check_branch
      %205 = sbr.rel (0) target = $region21
    $region20: #{full_pipeline_forward.1} parent=1 // pred_region
      %206 = dma.done [#allocation3], 128
    $region21: #{full_pipeline_forward.1} parent=1 // pred_fallthru
      _
    %207 = vsyncpa [#allocation3], 1

</llo_original>
